<compile_context>
chip_gen: v7x
topology: tpu7x:2x2x1
jax: 0.10.0
libtpu: 0.0.40
codegen_flags: <defaults>
</compile_context>

<pallas_src>
import functools

import jax
import jax.numpy as jnp
import numpy as np
from jax.experimental import pallas as pl
from jax.experimental.pallas import tpu as pltpu


# --------------------------------------------------------------------------
# In-kernel helpers
# --------------------------------------------------------------------------
def _fused_logits(patches_ref, w_patch_ref, pos_ref, w_head_ref, b_head_ref):
    """Patch-embed matmul + pos add + head matmul, all rows of this grid step."""
    x = patches_ref[...]                                            # (bt*P, patch_dim) bf16
    emb = jnp.dot(x, w_patch_ref[...], preferred_element_type=jnp.float32)
    emb = emb + pos_ref[...]                                        # pos has patch bias pre-fused (f32 epilogue)
    logits = jnp.dot(emb.astype(jnp.bfloat16), w_head_ref[...],
                     preferred_element_type=jnp.float32)
    return logits + b_head_ref[...]                                 # (bt*P, n_pad) f32


def _head_reduce(lg, n_classes):
    """First-argmax index + max softmax prob for a (t_out, n_pad) logits tile."""
    npad = lg.shape[-1]
    m = jnp.max(lg, axis=-1, keepdims=True)                         # (t_out, 1)
    iota = jax.lax.broadcasted_iota(jnp.int32, lg.shape, 1)
    first_max = jnp.min(jnp.where(lg == m, iota, npad), axis=-1, keepdims=True)
    idx = jnp.minimum(first_max, n_classes - 1)                     # NaN / pad guard
    # max softmax prob = exp(0) / sum(exp(x - m)) = 1 / denom  (EUP reciprocal, ~free)
    denom = jnp.sum(jnp.exp(lg - m), axis=-1, keepdims=True)
    prob = pl.reciprocal(denom, approx=True)
    # Pack [idx, prob] into one lane-2 tile: a single small output stream instead
    # of two separate lane-1 masked stores.
    lane = jax.lax.broadcasted_iota(jnp.int32, (lg.shape[0], 2), 1)
    return jnp.where(lane == 0, idx.astype(jnp.float32), prob)      # (t_out, 2) f32


# --------------------------------------------------------------------------
# Fused kernels (with / without out_map store)
# --------------------------------------------------------------------------
def _vitstr_kernel(patches_ref, w_patch_ref, pos_ref, w_head_ref, b_head_ref,
                   pk_ref, *, bt, num_patches, t_out, n_classes):
    logits = _fused_logits(patches_ref, w_patch_ref, pos_ref, w_head_ref, b_head_ref)
    for b in range(bt):                                             # static, bt is tiny
        lg = logits[b * num_patches: b * num_patches + t_out, :]
        pk_ref[b] = _head_reduce(lg, n_classes)


def _vitstr_kernel_omap(patches_ref, w_patch_ref, pos_ref, w_head_ref, b_head_ref,
                        omap_ref, pk_ref, *, bt, num_patches, t_out, n_classes):
    logits = _fused_logits(patches_ref, w_patch_ref, pos_ref, w_head_ref, b_head_ref)
    for b in range(bt):
        lg = logits[b * num_patches: b * num_patches + t_out, :]
        omap_ref[b] = lg                                            # lane-dense (t_out, 128) store
        pk_ref[b] = _head_reduce(lg, n_classes)


# --------------------------------------------------------------------------
# Wrapper: grid / BlockSpecs
# --------------------------------------------------------------------------
def _pick_batch_tile(B, num_patches):
    # Fold the batch into the matmul M dimension: target ~256 rows per grid step
    # to amortize the ~0.35us per-step overhead, but keep >= 2 grid steps when
    # B >= 2 so both TensorCores are used on v7x.
    target = max(1, 256 // max(num_patches, 1))
    bt = min(target, max(1, B // 2)) if B >= 2 else 1
    while bt > 1 and B % bt:
        bt -= 1
    return max(bt, 1)


def vitstr_fused(patches_flat, w_patch, pos_tile, w_head_pad, b_head_pad, *,
                 B, bt, num_patches, t_out, n_classes, with_omap):
    patch_dim = patches_flat.shape[-1]
    E = w_patch.shape[-1]
    n_pad = w_head_pad.shape[-1]
    m_blk = bt * num_patches                                        # multiple of 8
    grid = (B // bt,)

    in_specs = [
        pl.BlockSpec((m_blk, patch_dim), lambda i: (i, 0)),         # patches (batch folded into M)
        pl.BlockSpec((patch_dim, E), lambda i: (0, 0)),             # patch-proj weights (bf16)
        pl.BlockSpec((m_blk, E), lambda i: (0, 0)),                 # pos-emb (+bias), tiled to M block
        pl.BlockSpec((E, n_pad), lambda i: (0, 0)),                 # head weights, lane-padded
        pl.BlockSpec((1, n_pad), lambda i: (0, 0)),                 # head bias, lane-padded
    ]
    pk_shape = jax.ShapeDtypeStruct((B, t_out, 2), jnp.float32)     # packed [idx, prob]
    pk_spec = pl.BlockSpec((bt, t_out, 2), lambda i: (i, 0, 0))

    if with_omap:
        kernel = functools.partial(_vitstr_kernel_omap, bt=bt, num_patches=num_patches,
                                   t_out=t_out, n_classes=n_classes)
        out_shape = (jax.ShapeDtypeStruct((B, t_out, n_pad), jnp.float32), pk_shape)
        out_specs = [pl.BlockSpec((bt, t_out, n_pad), lambda i: (i, 0, 0)), pk_spec]
    else:
        kernel = functools.partial(_vitstr_kernel, bt=bt, num_patches=num_patches,
                                   t_out=t_out, n_classes=n_classes)
        out_shape = pk_shape
        out_specs = pk_spec

    return pl.pallas_call(
        kernel,
        out_shape=out_shape,
        grid_spec=pltpu.PrefetchScalarGridSpec(
            num_scalar_prefetch=0,
            grid=grid,
            in_specs=in_specs,
            out_specs=out_specs,
        ),
        compiler_params=pltpu.CompilerParams(
            dimension_semantics=("parallel",)),
    )(patches_flat, w_patch, pos_tile, w_head_pad, b_head_pad)


# ------------------------------ ViTSTR model ------------------------------
class ViTSTRPallas:
    """ViTSTR forward: backbone features -> head Linear -> drop cls token ->
    postprocessor (argmax + max softmax prob -> (word, prob))."""

    def __init__(self, vocab, embedding_units, max_length=8,
                 input_shape=(3, 16, 32), patch_size=(4, 4), key=None):
        self.vocab = vocab
        self.max_length = max_length + 2               # as in the PyTorch module
        self.embedding_units = embedding_units
        C, H, W = input_shape
        ph, pw = patch_size
        self.patch_size = patch_size
        nh, nw = H // ph, W // pw
        self.num_patches = nh * nw
        self.patch_dim = C * ph * pw
        self.n_classes = len(vocab) + 1
        self.n_classes_pad = ((self.n_classes + 127) // 128) * 128  # lane-pad to 128
        assert self.num_patches >= self.max_length - 1

        k = jax.random.PRNGKey(0) if key is None else key
        k1, k2, k3, k4, k5 = jax.random.split(k, 5)
        s = 0.02
        E = embedding_units

        w_patch = s * jax.random.normal(k1, (self.patch_dim, E), jnp.float32)
        self.w_patch = w_patch.astype(jnp.bfloat16)    # bf16 MXU weights, f32 accumulate
        b_patch = jnp.zeros((1, E), jnp.float32)

        # Stand-in backbone params: cls token + positional embedding.  The cls row's
        # head output is discarded by the reference forward (logits[:, 1:]), so the
        # fused kernel elides its compute; the parameter is kept for fidelity.
        self.cls_token = s * jax.random.normal(k2, (1, 1, E), jnp.float32)
        pos_emb = s * jax.random.normal(k3, (1, 1 + self.num_patches, E), jnp.float32)
        # Pre-fuse the patch-projection bias into the patch positional embeddings
        # (removes one input DMA stream + one broadcast add per grid step).
        self.pos_pb = pos_emb[0, 1:, :] + b_patch      # (num_patches, E) f32

        w_head = s * jax.random.normal(k4, (E, self.n_classes), jnp.float32)
        b_head = s * jax.random.normal(k5, (1, self.n_classes), jnp.float32)
        # Lane-pad the head to 128 classes: padded columns get zero weights and a
        # -1e30 bias so they never win argmax and add ~0 to the softmax denominator.
        w_pad = jnp.zeros((E, self.n_classes_pad), jnp.float32)
        w_pad = w_pad.at[:, : self.n_classes].set(w_head)
        b_pad = jnp.full((1, self.n_classes_pad), -1e30, jnp.float32)
        b_pad = b_pad.at[:, : self.n_classes].set(b_head)
        self.w_head_pad = w_pad.astype(jnp.bfloat16)
        self.b_head_pad = b_pad                        # epilogue kept f32 (v5e VPU has no bf16)

        self._embedding = list(vocab) + ["<eos>"]

    # ------------------------- patchify (glue) ---------------------------
    def _patchify(self, x):
        # TODO(synk): doctr injects a full ViT encoder backbone here; this is a
        # deterministic patch-embed stand-in.  The bf16 cast fuses into the XLA
        # transpose and halves the HBM->VMEM DMA bytes of the largest input.
        B, C, H, W = x.shape
        ph, pw = self.patch_size
        nh, nw = H // ph, W // pw
        p = x.reshape(B, C, nh, ph, nw, pw).transpose(0, 2, 4, 1, 3, 5)
        return p.reshape(B * nh * nw, C * ph * pw).astype(jnp.bfloat16)

    # ------------------------------ forward -------------------------------
    def forward(self, x, return_model_output=False, return_preds=True):
        B = x.shape[0]
        patches = self._patchify(x)                    # (B*num_patches, patch_dim) bf16
        t_out = self.max_length - 1                    # cls token dropped by logits[:, 1:]
        bt = _pick_batch_tile(B, self.num_patches)
        pos_tile = jnp.tile(self.pos_pb, (bt, 1))      # (bt*num_patches, E) f32

        outs = vitstr_fused(
            patches, self.w_patch, pos_tile, self.w_head_pad, self.b_head_pad,
            B=B, bt=bt, num_patches=self.num_patches, t_out=t_out,
            n_classes=self.n_classes, with_omap=return_model_output)

        out = {}
        if return_model_output:
            omap_pad, packed = outs
            out["out_map"] = omap_pad[:, :, : self.n_classes]   # (B, T-1, V+1) f32
        else:
            packed = outs
        if return_preds:
            out["preds"] = self._decode(packed)
        # TODO(synk): compute_loss path (target is not None) omitted; inference only.
        return out

    # ---------------------- string decode (host side) ---------------------
    def _decode(self, packed):
        pk = np.asarray(jax.device_get(packed))        # (B, t_out, 2): [idx, prob]
        idx_np = pk[..., 0].astype(np.int32)
        prob_np = pk[..., 1]
        words = ["".join(self._embedding[int(i)] for i in row).split("<eos>")[0]
                 for row in idx_np]
        probs = [float(np.clip(prob_np[i, : len(w)], 0, 1).mean()) if w else 0.0
                 for i, w in enumerate(words)]
        return list(zip(words, probs))


if __name__ == "__main__":
    vocab = "abcdefghijklmnopqrstuvwxyz0123"           # 30 chars -> 31 output classes
    key = jax.random.PRNGKey(0)
    k_in, k_param = jax.random.split(key)
    model = ViTSTRPallas(vocab, embedding_units=32, max_length=8,
                         input_shape=(3, 16, 32), key=k_param)
    # NCHW image input, small shape consistent with the module's conventions
    x = jax.random.normal(k_in, (2, 3, 16, 32), dtype=jnp.float32)

    # Default inference path: no out_map store (fast path).
    out_fast = model.forward(x, return_model_output=False, return_preds=True)
    assert len(out_fast["preds"]) == 2

    # Debug path: also emits the padded-logits out_map.
    out_full = model.forward(x, return_model_output=True, return_preds=True)
    jax.block_until_ready(out_full["out_map"])
    assert out_full["out_map"].shape == (2, model.max_length - 1, len(vocab) + 1)
    assert len(out_full["preds"]) == 2
    assert [w for w, _ in out_fast["preds"]] == [w for w, _ in out_full["preds"]]
    print("KERNEL_OK")
</pallas_src>

<mosaic_0001>
module attributes {stable_mosaic.version = 11 : i64} {
  func.func @_vitstr_kernel(%arg0: i32, %arg1: memref<32x48xbf16, #tpu.memory_space<vmem>>, %arg2: memref<48x32xbf16, #tpu.memory_space<vmem>>, %arg3: memref<32x32xf32, #tpu.memory_space<vmem>>, %arg4: memref<32x128xbf16, #tpu.memory_space<vmem>>, %arg5: memref<1x128xf32, #tpu.memory_space<vmem>>, %arg6: memref<1x9x2xf32, #tpu.memory_space<vmem>>) attributes {dimension_semantics = [#tpu.dimension_semantics<parallel>], iteration_bounds = array<i64: 2>, scalar_prefetch = 0 : i64, scratch_operands = 0 : i64, tpu.core_type = #tpu.core_type<tc>, window_params = [{transform_indices = @transform_0, window_bounds = array<i64: 32, 48>}, {pipeline_mode = #tpu.pipeline_mode<synchronous>, transform_indices = @transform_1, window_bounds = array<i64: 48, 32>}, {pipeline_mode = #tpu.pipeline_mode<synchronous>, transform_indices = @transform_2, window_bounds = array<i64: 32, 32>}, {pipeline_mode = #tpu.pipeline_mode<synchronous>, transform_indices = @transform_3, window_bounds = array<i64: 32, 128>}, {pipeline_mode = #tpu.pipeline_mode<synchronous>, transform_indices = @transform_4, window_bounds = array<i64: 1, 128>}, {transform_indices = @transform_5, window_bounds = array<i64: 1, 9, 2>}]} {
    %c0 = arith.constant 0 : index
    %c0_0 = arith.constant 0 : index
    %0 = vector.load %arg1[%c0, %c0_0] : memref<32x48xbf16, #tpu.memory_space<vmem>>, vector<32x48xbf16>
    %c0_1 = arith.constant 0 : index
    %c0_2 = arith.constant 0 : index
    %1 = vector.load %arg2[%c0_1, %c0_2] : memref<48x32xbf16, #tpu.memory_space<vmem>>, vector<48x32xbf16>
    %cst = arith.constant dense<0.000000e+00> : vector<32x32xf32>
    %2 = tpu.matmul %0, %1, %cst {dimension_numbers = #tpu.dot_dimension_numbers<[1], [0], [0], [1], [0, 0, 1, 1], [], []>} : vector<32x48xbf16>, vector<48x32xbf16>, vector<32x32xf32> -> vector<32x32xf32>
    %c0_3 = arith.constant 0 : index
    %c0_4 = arith.constant 0 : index
    %3 = vector.load %arg3[%c0_3, %c0_4] : memref<32x32xf32, #tpu.memory_space<vmem>>, vector<32x32xf32>
    %4 = arith.addf %2, %3 : vector<32x32xf32>
    %5 = arith.truncf %4 : vector<32x32xf32> to vector<32x32xbf16>
    %c0_5 = arith.constant 0 : index
    %c0_6 = arith.constant 0 : index
    %6 = vector.load %arg4[%c0_5, %c0_6] : memref<32x128xbf16, #tpu.memory_space<vmem>>, vector<32x128xbf16>
    %cst_7 = arith.constant dense<0.000000e+00> : vector<32x128xf32>
    %7 = tpu.matmul %5, %6, %cst_7 {dimension_numbers = #tpu.dot_dimension_numbers<[1], [0], [0], [1], [0, 0, 1, 1], [], []>} : vector<32x32xbf16>, vector<32x128xbf16>, vector<32x128xf32> -> vector<32x128xf32>
    %c0_8 = arith.constant 0 : index
    %c0_9 = arith.constant 0 : index
    %8 = vector.load %arg5[%c0_8, %c0_9] : memref<1x128xf32, #tpu.memory_space<vmem>>, vector<1x128xf32>
    %9 = vector.broadcast %8 : vector<1x128xf32> to vector<32x128xf32>
    %10 = arith.addf %7, %9 : vector<32x128xf32>
    %11 = vector.extract_strided_slice %10 {offsets = [0, 0], sizes = [9, 128], strides = [1, 1]} : vector<32x128xf32> to vector<9x128xf32>
    %cst_10 = arith.constant dense<0xFF800000> : vector<9xf32>
    %12 = vector.multi_reduction <maximumf>, %11, %cst_10 [1] : vector<9x128xf32> to vector<9xf32>
    %13 = vector.shape_cast %12 : vector<9xf32> to vector<9x1xf32>
    %14 = tpu.iota {dimensions = array<i32: 1>} : vector<9x128xi32>
    %15 = vector.broadcast %13 : vector<9x1xf32> to vector<9x128xf32>
    %16 = arith.cmpf oeq, %11, %15 : vector<9x128xf32>
    %c128_i32 = arith.constant 128 : i32
    %17 = vector.broadcast %c128_i32 : i32 to vector<9x128xi32>
    %18 = arith.select %16, %14, %17 : vector<9x128xi1>, vector<9x128xi32>
    %cst_11 = arith.constant dense<2147483647> : vector<9xi32>
    %19 = vector.multi_reduction <minsi>, %18, %cst_11 [1] : vector<9x128xi32> to vector<9xi32>
    %20 = vector.shape_cast %19 : vector<9xi32> to vector<9x1xi32>
    %c30_i32 = arith.constant 30 : i32
    %21 = vector.broadcast %c30_i32 : i32 to vector<9x1xi32>
    %22 = arith.minsi %20, %21 : vector<9x1xi32>
    %23 = vector.broadcast %13 : vector<9x1xf32> to vector<9x128xf32>
    %24 = arith.subf %11, %23 : vector<9x128xf32>
    %25 = math.exp %24 : vector<9x128xf32>
    %cst_12 = arith.constant dense<0.000000e+00> : vector<9xf32>
    %26 = vector.multi_reduction <add>, %25, %cst_12 [1] : vector<9x128xf32> to vector<9xf32>
    %27 = vector.shape_cast %26 : vector<9xf32> to vector<9x1xf32>
    %28 = tpu.reciprocal %27 {approx = true} : vector<9x1xf32> -> vector<9x1xf32>
    %29 = tpu.iota {dimensions = array<i32: 1>} : vector<9x2xi32>
    %c0_i32 = arith.constant 0 : i32
    %30 = vector.broadcast %c0_i32 : i32 to vector<9x2xi32>
    %31 = arith.cmpi eq, %29, %30 : vector<9x2xi32>
    %32 = arith.sitofp %22 : vector<9x1xi32> to vector<9x1xf32>
    %33 = vector.shape_cast %32 : vector<9x1xf32> to vector<9x1xf32>
    %34 = vector.broadcast %33 : vector<9x1xf32> to vector<9x2xf32>
    %35 = vector.shape_cast %28 : vector<9x1xf32> to vector<9x1xf32>
    %36 = vector.broadcast %35 : vector<9x1xf32> to vector<9x2xf32>
    %37 = arith.select %31, %34, %36 : vector<9x2xi1>, vector<9x2xf32>
    %c0_13 = arith.constant 0 : index
    %c0_14 = arith.constant 0 : index
    %c0_15 = arith.constant 0 : index
    %38 = vector.load %arg6[%c0_13, %c0_14, %c0_15] : memref<1x9x2xf32, #tpu.memory_space<vmem>>, vector<1x9x2xf32>
    %39 = vector.shape_cast %38 : vector<1x9x2xf32> to vector<9x2xf32>
    %40 = vector.shape_cast %37 : vector<9x2xf32> to vector<1x9x2xf32>
    tpu.vector_store %arg6[%c0_13, %c0_14, %c0_15], %40 {strides = array<i32>} : memref<1x9x2xf32, #tpu.memory_space<vmem>>, vector<1x9x2xf32>,
    return
  }
  func.func @transform_0(%arg0: i32) -> (i32, i32) {
    %c0_i32 = arith.constant 0 : i32
    %c0_i32_0 = arith.constant 0 : i32
    return %arg0, %c0_i32 : i32, i32
  }
  func.func @transform_1(%arg0: i32) -> (i32, i32) {
    %c0_i32 = arith.constant 0 : i32
    %c0_i32_0 = arith.constant 0 : i32
    %c0_i32_1 = arith.constant 0 : i32
    return %c0_i32, %c0_i32_0 : i32, i32
  }
  func.func @transform_2(%arg0: i32) -> (i32, i32) {
    %c0_i32 = arith.constant 0 : i32
    %c0_i32_0 = arith.constant 0 : i32
    %c0_i32_1 = arith.constant 0 : i32
    return %c0_i32, %c0_i32_0 : i32, i32
  }
  func.func @transform_3(%arg0: i32) -> (i32, i32) {
    %c0_i32 = arith.constant 0 : i32
    %c0_i32_0 = arith.constant 0 : i32
    %c0_i32_1 = arith.constant 0 : i32
    return %c0_i32, %c0_i32_0 : i32, i32
  }
  func.func @transform_4(%arg0: i32) -> (i32, i32) {
    %c0_i32 = arith.constant 0 : i32
    %c0_i32_0 = arith.constant 0 : i32
    %c0_i32_1 = arith.constant 0 : i32
    return %c0_i32, %c0_i32_0 : i32, i32
  }
  func.func @transform_5(%arg0: i32) -> (i32, i32, i32) {
    %c0_i32 = arith.constant 0 : i32
    %c0_i32_0 = arith.constant 0 : i32
    %c0_i32_1 = arith.constant 0 : i32
    return %arg0, %c0_i32, %c0_i32_0 : i32, i32, i32
  }
}

</mosaic_0001>

<llo_original>
// kernel: tpu_custom_call.1
$region0: #{tpu_custom_call.1}
  #allocation0 [shape = 'u32[]', space=smem, size = 0x4, offset = 0x4, fixed_abs, tag = 'smem constant byte address 0x4 - core index']
  #allocation1 [shape = 'u32[144,128]{1,0:T(1,128)}', space=vmem, size = 0x12000, scoped, tag = 'internal scratch']
  %s0 = inlined_call_operand.vmem [shape: bf16[64,48], index: 0, kind: input, shape index: {}]
  %s1 = inlined_call_operand.vmem [shape: bf16[48,32], index: 1, kind: input, shape index: {}]
  %s2 = inlined_call_operand.vmem [shape: f32[32,32], index: 2, kind: input, shape index: {}]
  %s3 = inlined_call_operand.vmem [shape: bf16[32,128], index: 3, kind: input, shape index: {}]
  %s4 = inlined_call_operand.vmem [shape: f32[1,128], index: 4, kind: input, shape index: {}]
  %s5 = inlined_call_operand.vmem [shape: f32[2,9,2], index: 5, kind: output, shape index: {}]
  %s6 = sld [smem:[#allocation0]]
  $region53: #{tpu_custom_call.1} parent=0
    _
  %s8 = ssub.s32 1, %s6
  %s9 = scalar_select 0, %s8, %s6
  loop: start=0, step=1, limit=4
  $region2: #{tpu_custom_call.1} parent=0 // loop_pre_header
    _
  $region3: #{tpu_custom_call.1} parent=0 // loop_header
    %s11 = sphi 0, %s15
    %p12 = scmp.ge.s32.totalorder %s11, 4
    %s21 = sphi 0, %s23
    %s24 = sphi 0, %s21
    %s25 = sphi 0, %s24
    %s41 = sphi 0, %s25
    %s45 = sphi 0, %s45
    %s47 = sphi 0, %s45
    %s48 = sphi 0, %s47
    %s62 = sphi 0, %s48
    %s66 = sphi 0, %s66
    %s68 = sphi 0, %s66
    %s69 = sphi 0, %s68
    %s83 = sphi 0, %s69
    %s87 = sphi 0, %s87
    %s89 = sphi 0, %s87
    %s90 = sphi 0, %s89
    %s104 = sphi 0, %s90
    %s108 = sphi 0, %s108
    %s110 = sphi 0, %s108
    %s111 = sphi 0, %s110
    %s125 = sphi 0, %s111
    %s131 = sphi 0, %s133
    %s134 = sphi 0, %s131
    %s135 = sphi 0, %s134
    %s151 = sphi 0, %s135
  $region4: #{tpu_custom_call.1} parent=0 // loop_header_branch
    %14 = sbr.rel (%p12) target = $region8
  $region5: #{tpu_custom_call.1} parent=0 // loop_body
    %s16 = ssub.s32 %s11, 1
    %s17 = ssub.s32 %s11, 2
    %s18 = sadd.s32 %s11, 1
    %s19 = ssub.s32 %s11, %s18
    %p20 = scmp.eq.s32.totalorder %s19, 0
    %s22 = sadd.s32 %s21, 1
    %s23 = scalar_select %p20, %s21, %s22
    %p26 = pneg %p20
    %p27 = scmp.eq.s32.totalorder %s11, 1
    %p28 = por %p26, %p27
    %p29 = scmp.ne.s32.totalorder %s21, %s24
    %p30 = scmp.eq.s32.totalorder %s11, 0
    %p31 = por %p29, %p30
    %p32 = scmp.ne.s32.totalorder %s21, %s24
    %p33 = scmp.eq.s32.totalorder %s16, 1
    %p34 = por %p32, %p33
    %p35 = scmp.ne.s32.totalorder %s24, %s25
    %p36 = scmp.eq.s32.totalorder %s16, 0
    %p37 = por %p35, %p36
    %p38 = scmp.ne.s32.totalorder %s24, %s25
    %p39 = scmp.eq.s32.totalorder %s17, 1
    %p40 = por %p38, %p39
    %p42 = scmp.ne.s32.totalorder %s25, %s41
    %p43 = scmp.eq.s32.totalorder %s17, 0
    %p44 = por %p42, %p43
    %s46 = sadd.s32 %s45, 1
    %p49 = scmp.eq.s32.totalorder %s11, 1
    %p50 = scmp.ne.s32.totalorder %s45, %s47
    %p51 = scmp.eq.s32.totalorder %s11, 0
    %p52 = por %p50, %p51
    %p53 = scmp.ne.s32.totalorder %s45, %s47
    %p54 = scmp.eq.s32.totalorder %s16, 1
    %p55 = por %p53, %p54
    %p56 = scmp.ne.s32.totalorder %s47, %s48
    %p57 = scmp.eq.s32.totalorder %s16, 0
    %p58 = por %p56, %p57
    %p59 = scmp.ne.s32.totalorder %s47, %s48
    %p60 = scmp.eq.s32.totalorder %s17, 1
    %p61 = por %p59, %p60
    %p63 = scmp.ne.s32.totalorder %s48, %s62
    %p64 = scmp.eq.s32.totalorder %s17, 0
    %p65 = por %p63, %p64
    %s67 = sadd.s32 %s66, 1
    %p70 = scmp.eq.s32.totalorder %s11, 1
    %p71 = scmp.ne.s32.totalorder %s66, %s68
    %p72 = scmp.eq.s32.totalorder %s11, 0
    %p73 = por %p71, %p72
    %p74 = scmp.ne.s32.totalorder %s66, %s68
    %p75 = scmp.eq.s32.totalorder %s16, 1
    %p76 = por %p74, %p75
    %p77 = scmp.ne.s32.totalorder %s68, %s69
    %p78 = scmp.eq.s32.totalorder %s16, 0
    %p79 = por %p77, %p78
    %p80 = scmp.ne.s32.totalorder %s68, %s69
    %p81 = scmp.eq.s32.totalorder %s17, 1
    %p82 = por %p80, %p81
    %p84 = scmp.ne.s32.totalorder %s69, %s83
    %p85 = scmp.eq.s32.totalorder %s17, 0
    %p86 = por %p84, %p85
    %s88 = sadd.s32 %s87, 1
    %p91 = scmp.eq.s32.totalorder %s11, 1
    %p92 = scmp.ne.s32.totalorder %s87, %s89
    %p93 = scmp.eq.s32.totalorder %s11, 0
    %p94 = por %p92, %p93
    %p95 = scmp.ne.s32.totalorder %s87, %s89
    %p96 = scmp.eq.s32.totalorder %s16, 1
    %p97 = por %p95, %p96
    %p98 = scmp.ne.s32.totalorder %s89, %s90
    %p99 = scmp.eq.s32.totalorder %s16, 0
    %p100 = por %p98, %p99
    %p101 = scmp.ne.s32.totalorder %s89, %s90
    %p102 = scmp.eq.s32.totalorder %s17, 1
    %p103 = por %p101, %p102
    %p105 = scmp.ne.s32.totalorder %s90, %s104
    %p106 = scmp.eq.s32.totalorder %s17, 0
    %p107 = por %p105, %p106
    %s109 = sadd.s32 %s108, 1
    %p112 = scmp.eq.s32.totalorder %s11, 1
    %p113 = scmp.ne.s32.totalorder %s108, %s110
    %p114 = scmp.eq.s32.totalorder %s11, 0
    %p115 = por %p113, %p114
    %p116 = scmp.ne.s32.totalorder %s108, %s110
    %p117 = scmp.eq.s32.totalorder %s16, 1
    %p118 = por %p116, %p117
    %p119 = scmp.ne.s32.totalorder %s110, %s111
    %p120 = scmp.eq.s32.totalorder %s16, 0
    %p121 = por %p119, %p120
    %p122 = scmp.ne.s32.totalorder %s110, %s111
    %p123 = scmp.eq.s32.totalorder %s17, 1
    %p124 = por %p122, %p123
    %p126 = scmp.ne.s32.totalorder %s111, %s125
    %p127 = scmp.eq.s32.totalorder %s17, 0
    %p128 = por %p126, %p127
    %s129 = ssub.s32 %s11, %s18
    %p130 = scmp.eq.s32.totalorder %s129, 0
    %s132 = sadd.s32 %s131, 1
    %s133 = scalar_select %p130, %s131, %s132
    %p136 = pneg %p130
    %p137 = scmp.eq.s32.totalorder %s11, 1
    %p138 = por %p136, %p137
    %p139 = scmp.ne.s32.totalorder %s131, %s134
    %p140 = scmp.eq.s32.totalorder %s11, 0
    %p141 = por %p139, %p140
    %p142 = scmp.ne.s32.totalorder %s131, %s134
    %p143 = scmp.eq.s32.totalorder %s16, 1
    %p144 = por %p142, %p143
    %p145 = scmp.ne.s32.totalorder %s134, %s135
    %p146 = scmp.eq.s32.totalorder %s16, 0
    %p147 = por %p145, %p146
    %p148 = scmp.ne.s32.totalorder %s134, %s135
    %p149 = scmp.eq.s32.totalorder %s17, 1
    %p150 = por %p148, %p149
    %p152 = scmp.ne.s32.totalorder %s135, %s151
    %p153 = scmp.eq.s32.totalorder %s17, 0
    %p154 = por %p152, %p153
    %p155 = scmp.le.s32.totalorder 1, %s11
    %p156 = scmp.lt.s32.totalorder %s11, 3
    %p157 = pnand %p155, %p156
    %p158 = pneg %p157
    // Predicated region
    $region9: #{tpu_custom_call.1} parent=5 // pred_check
      _
    $region10: #{tpu_custom_call.1} parent=5 // pred_check_branch
      %160 = sbr.rel (%p157) target = $region12
    $region11: #{tpu_custom_call.1} parent=5 // pred_region
      %s161 = ssub.s32 %s11, 1
      // Predicated region
      $region13: #{tpu_custom_call.1} parent=11 // pred_check
        %p162 = pneg %p58
      $region14: #{tpu_custom_call.1} parent=11 // pred_check_branch
        %164 = sbr.rel (%p162) target = $region16
      $region15: #{tpu_custom_call.1} parent=11 // pred_region
        _
      $region16: #{tpu_custom_call.1} parent=11 // pred_fallthru
        _
      // Predicated region
      $region17: #{tpu_custom_call.1} parent=11 // pred_check
        %p165 = pneg %p79
      $region18: #{tpu_custom_call.1} parent=11 // pred_check_branch
        %167 = sbr.rel (%p165) target = $region20
      $region19: #{tpu_custom_call.1} parent=11 // pred_region
        _
      $region20: #{tpu_custom_call.1} parent=11 // pred_fallthru
        _
      // Predicated region
      $region21: #{tpu_custom_call.1} parent=11 // pred_check
        %p168 = pneg %p100
      $region22: #{tpu_custom_call.1} parent=11 // pred_check_branch
        %170 = sbr.rel (%p168) target = $region24
      $region23: #{tpu_custom_call.1} parent=11 // pred_region
        _
      $region24: #{tpu_custom_call.1} parent=11 // pred_fallthru
        _
      // Predicated region
      $region25: #{tpu_custom_call.1} parent=11 // pred_check
        %p171 = pneg %p121
      $region26: #{tpu_custom_call.1} parent=11 // pred_check_branch
        %173 = sbr.rel (%p171) target = $region28
      $region27: #{tpu_custom_call.1} parent=11 // pred_region
        _
      $region28: #{tpu_custom_call.1} parent=11 // pred_fallthru
        _
    $region12: #{tpu_custom_call.1} parent=5 // pred_fallthru
      _
    %p174 = scmp.lt.s32.totalorder %s11, 2
    // Predicated region
    $region29: #{tpu_custom_call.1} parent=5 // pred_check
      %p175 = pneg %p174
    $region30: #{tpu_custom_call.1} parent=5 // pred_check_branch
      %177 = sbr.rel (%p175) target = $region32
    $region31: #{tpu_custom_call.1} parent=5 // pred_region
      // Predicated region
      $region33: #{tpu_custom_call.1} parent=31 // pred_check
        %p178 = pneg %p31
      $region34: #{tpu_custom_call.1} parent=31 // pred_check_branch
        %180 = sbr.rel (%p178) target = $region36
      $region35: #{tpu_custom_call.1} parent=31 // pred_region
        %s181 = smul.u32 4, %s11
        %p182 = scmp.lt.s32.totalorder %s181, 7
        %s183 = scalar_select %p182, %s181, 7
        %s184 = smul.addr %s183, 4
        %s185 = scalar_lea.vmem %s0, %s184
        %s186 = smul.u32 4, %s11
      $region36: #{tpu_custom_call.1} parent=31 // pred_fallthru
        _
    $region32: #{tpu_custom_call.1} parent=5 // pred_fallthru
      _
    %p187 = scmp.le.s32.totalorder 1, %s11
    %p188 = scmp.lt.s32.totalorder %s11, 3
    %p189 = pnand %p187, %p188
    %p190 = pneg %p189
    // Predicated region
    $region37: #{tpu_custom_call.1} parent=5 // pred_check
      _
    $region38: #{tpu_custom_call.1} parent=5 // pred_check_branch
      %192 = sbr.rel (%p189) target = $region40
    $region39: #{tpu_custom_call.1} parent=5 // pred_region
      %s193 = ssub.s32 %s11, 1
      %s194 = smul.u32 4, %s16
      %p195 = scmp.lt.s32.totalorder %s194, 7
      %s196 = scalar_select %p195, %s194, 7
      %s197 = smul.addr %s196, 4
      %s198 = scalar_lea.vmem %s0, %s197
      %p199 = pneg %p37
      %p200 = pneg %p34
      %p201 = pneg %p58
      %p202 = pneg %p55
      %p203 = pneg %p79
      %p204 = pneg %p76
      %p205 = pneg %p100
      %p206 = pneg %p97
      %p207 = pneg %p121
      %p208 = pneg %p118
      %p209 = pneg %p147
      %p210 = pneg %p144
      %p211 = scmp.lt.s32.totalorder %s16, 1
      %s212 = scalar_select %p211, %s16, 1
      %s213 = smul.addr %s212, 2
      %s214 = smul.addr %s213, 8
      %s215 = scalar_lea.vmem %s5, %s214
      %s216 = smul.u32 4, %s16
      %p217 = scmp.lt.s32.totalorder %s216, 7
      %s218 = scalar_select %p217, %s216, 7
      %s219 = smul.addr %s218, 4
      %s220 = scalar_lea.vmem %s0, %s219
      %s221 = smul.u32 4, %s16
      %p222 = scmp.lt.s32.totalorder %s16, 1
      %s223 = scalar_select %p222, %s16, 1
      %s224 = smul.addr %s223, 2
      %s225 = smul.addr %s224, 8
      %s226 = scalar_lea.vmem %s5, %s225
      %v228 = vld [vmem:[%s220] sm:$0xf]
      %v229 = vld [vmem:[%s220 + $0x4] sm:$0xf]
      %v230 = vld [vmem:[%s220 + $0x8] sm:$0xf]
      %v231 = vld [vmem:[%s220 + $0xc] sm:$0xf]
      %v232 = vld [vmem:[%s1] sm:$0xf]
      %v233 = vld [vmem:[%s1 + $0x4] sm:$0xf]
      %v234 = vld [vmem:[%s1 + $0x8] sm:$0xf]
      %v235 = vld [vmem:[%s1 + $0xc] sm:$0xf]
      %v236 = vld [vmem:[%s1 + $0x10] sm:$0xf]
      %v237 = vld [vmem:[%s1 + $0x14] sm:$0xf]
      %v238 = vld [vmem:[%s2] sm:$0xff]
      %v239 = vld [vmem:[%s2 + $0x8] sm:$0xff]
      %v240 = vld [vmem:[%s2 + $0x10] sm:$0xff]
      %v241 = vld [vmem:[%s2 + $0x18] sm:$0xff]
      %v246 = vunpack.c.l.b16 %v228
      %v247 = vunpack.c.l.b16 %v229
      %v248 = vunpack.c.l.b16 %v230
      %v249 = vunpack.c.l.b16 %v231
      %v250 = vpack.c.b16 %v247, %v246
      %v251 = vpack.c.b16 %v249, %v248
      %v258 = vunpack.c.l.b16 %v232
      %v259 = vunpack.c.l.b16 %v233
      %v260 = vunpack.c.l.b16 %v234
      %v261 = vunpack.c.l.b16 %v235
      %v262 = vunpack.c.l.b16 %v236
      %v263 = vunpack.c.l.b16 %v237
      %v264 = vpack.c.b16 %v259, %v258
      %v265 = vpack.c.b16 %v261, %v260
      %v266 = vpack.c.b16 %v263, %v262
      %vm270 = vcmask 392192
      %v272 = vsel %vm270, %v250, 0
      %v275 = vsel %vm270, %v251, 0
      %277 = vmatprep.subr.bf16.mxu0 0
      %278 = vmatpush1.bf16.msra.mxu0 %v264
      %279 = vmatprep.subr.bf16.mxu0 0
      %280 = vmatpush1.bf16.msra.mxu0 %v265
      %281 = vmatprep.subr.bf16.mxu0 0
      %282 = vmatpush1.bf16.msra.mxu0 %v266
      %283 = vmatprep.subr.bf16.mxu0 0
      %284 = vmatpush1.bf16.msra.mxu0 0
      %285 = vmatprep.subr.bf16.mxu0 0
      %286 = vmatpush1.bf16.msra.mxu0 0
      %287 = vmatprep.subr.bf16.mxu0 0
      %288 = vmatpush1.bf16.msra.mxu0 0
      %289 = vmatprep.subr.bf16.mxu0 0
      %290 = vmatpush1.bf16.msra.mxu0 0
      %291 = vmatprep.subr.bf16.mxu0 0
      %292 = vmatpush1.bf16.msra.mxu0 0
      %293 = vmatprep.subr.bf16.mxu0 0
      %294 = vmatpush1.bf16.msra.mxu0 0
      %295 = vmatprep.subr.bf16.mxu0 0
      %296 = vmatpush1.bf16.msra.mxu0 0
      %297 = vmatprep.subr.bf16.mxu0 0
      %298 = vmatpush1.bf16.msra.mxu0 0
      %299 = vmatprep.subr.bf16.mxu0 0
      %300 = vmatpush1.bf16.msra.mxu0 0
      %301 = vmatprep.subr.bf16.mxu0 0
      %302 = vmatpush1.bf16.msra.mxu0 0
      %303 = vmatprep.subr.bf16.mxu0 0
      %304 = vmatpush1.bf16.msra.mxu0 0
      %305 = vmatprep.subr.bf16.mxu0 0
      %306 = vmatpush1.bf16.msra.mxu0 0
      %307 = vmatprep.subr.bf16.mxu0 0
      %308 = vmatpush1.bf16.msra.mxu0 0
      %309 = vmatprep.mubr.bf16.mxu0 0
      %310 = vmatmul.mubr.bf16.gmra.mrb[0].mxu0 %v272
      %v311 = vpop.f32.mrb[0].mxu0
      %v312 = vadd.f32 %v238, %v311
      %v313 = vpop.f32.mrb[0].mxu0
      %v314 = vpop.f32.mrb[0].mxu0
      %v315 = vadd.f32 %v239, %v314
      %v316 = vpop.f32.mrb[0].mxu0
      %317 = vmatprep.mubr.bf16.mxu0 0
      %318 = vmatmul.mubr.bf16.gmra.mrb[0].mxu0 %v275
      %v319 = vpop.f32.mrb[0].mxu0
      %v320 = vadd.f32 %v240, %v319
      %v321 = vpop.f32.mrb[0].mxu0
      %v322 = vpop.f32.mrb[0].mxu0
      %v323 = vadd.f32 %v241, %v322
      %v324 = vpop.f32.mrb[0].mxu0
      %325 = vdwg.mxu0
      %v326 = vpack.c.bf16 %v315, %v312
      %v327 = vpack.c.bf16 %v323, %v320
      %v328 = vld [vmem:[%s3] sm:$0xf]
      %v329 = vld [vmem:[%s3 + $0x4] sm:$0xf]
      %v330 = vld [vmem:[%s3 + $0x8] sm:$0xf]
      %v331 = vld [vmem:[%s3 + $0xc] sm:$0xf]
      %v332 = vld [vmem:[%s4] sm:$0x1]
      %v334 = vlaneseq
      %v335 = vshrl.u32 %v334, 7
      %v336 = vsub.s32 0, %v335
      %v337 = vrot.slane %v332, %v336
      %v343 = vunpack.c.l.b16 %v328
      %v344 = vunpack.c.l.b16 %v329
      %v345 = vunpack.c.l.b16 %v330
      %v346 = vunpack.c.l.b16 %v331
      %v347 = vpack.c.b16 %v344, %v343
      %v348 = vpack.c.b16 %v346, %v345
      %vm351 = vcmask 261120
      %v353 = vsel %vm351, %v326, 0
      %v356 = vsel %vm351, %v327, 0
      %358 = vmatprep.subr.bf16.mxu0 0
      %359 = vmatpush1.bf16.msra.mxu0 %v347
      %360 = vmatprep.subr.bf16.mxu0 0
      %361 = vmatpush1.bf16.msra.mxu0 %v348
      %362 = vmatprep.subr.bf16.mxu0 0
      %363 = vmatpush1.bf16.msra.mxu0 0
      %364 = vmatprep.subr.bf16.mxu0 0
      %365 = vmatpush1.bf16.msra.mxu0 0
      %366 = vmatprep.subr.bf16.mxu0 0
      %367 = vmatpush1.bf16.msra.mxu0 0
      %368 = vmatprep.subr.bf16.mxu0 0
      %369 = vmatpush1.bf16.msra.mxu0 0
      %370 = vmatprep.subr.bf16.mxu0 0
      %371 = vmatpush1.bf16.msra.mxu0 0
      %372 = vmatprep.subr.bf16.mxu0 0
      %373 = vmatpush1.bf16.msra.mxu0 0
      %374 = vmatprep.subr.bf16.mxu0 0
      %375 = vmatpush1.bf16.msra.mxu0 0
      %376 = vmatprep.subr.bf16.mxu0 0
      %377 = vmatpush1.bf16.msra.mxu0 0
      %378 = vmatprep.subr.bf16.mxu0 0
      %379 = vmatpush1.bf16.msra.mxu0 0
      %380 = vmatprep.subr.bf16.mxu0 0
      %381 = vmatpush1.bf16.msra.mxu0 0
      %382 = vmatprep.subr.bf16.mxu0 0
      %383 = vmatpush1.bf16.msra.mxu0 0
      %384 = vmatprep.subr.bf16.mxu0 0
      %385 = vmatpush1.bf16.msra.mxu0 0
      %386 = vmatprep.subr.bf16.mxu0 0
      %387 = vmatpush1.bf16.msra.mxu0 0
      %388 = vmatprep.subr.bf16.mxu0 0
      %389 = vmatpush1.bf16.msra.mxu0 0
      %390 = vmatprep.mubr.bf16.mxu0 0
      %391 = vmatmul.mubr.bf16.gmra.mrb[0].mxu0 %v353
      %v392 = vpop.f32.mrb[0].mxu0
      %v393 = vadd.f32 %v337, %v392
      %v394 = vpop.f32.mrb[0].mxu0
      %v395 = vpop.f32.mrb[0].mxu0
      %v396 = vadd.f32 %v337, %v395
      %v397 = vpop.f32.mrb[0].mxu0
      %398 = vmatprep.mubr.bf16.mxu0 0
      %399 = vmatmul.mubr.bf16.gmra.mrb[0].mxu0 %v356
      %v400 = vpop.f32.mrb[0].mxu0
      %v401 = vpop.f32.mrb[0].mxu0
      %v402 = vpop.f32.mrb[0].mxu0
      %v403 = vpop.f32.mrb[0].mxu0
      %404 = vdwg.mxu0
      %405 = vmax.xlane.f32.xlu0 %v393
      %v406 = vpop.xlane.xlu0 %405
      %vm407 = vcmask 1040384
      %v408 = vsel %vm407, %v396, -inf
      %409 = vmax.xlane.f32.xlu0 %v408
      %v410 = vpop.xlane.xlu0 %409
      %v411 = vlaneseq
      %v412 = vand.u32 %v411, 127
      %vm413 = vcmp.eq.f32.partialorder %v393, %v406
      %vm414 = vcmp.eq.f32.partialorder %v396, %v410
      %v415 = vsel %vm413, %v412, 128
      %v416 = vsel %vm414, %v412, 128
      %v417 = vand.u32 %v415, 65535
      %v418 = vshra.s32 %v415, 16
      %v419 = vcvt.s32.f32 %v417
      %v420 = vcvt.s32.f32 %v418
      %421 = vmin.xlane.f32.xlu0 %v420
      %v422 = vpop.xlane.xlu0 %421
      %vm423 = vcmp.eq.f32.partialorder %v420, %v422
      %v424 = vsel %vm423, %v419, inf
      %425 = vmin.xlane.f32.xlu0 %v424
      %v426 = vpop.xlane.xlu0 %425
      %v427 = vcvt.f32.s32 %v426
      %v428 = vcvt.f32.s32 %v422
      %v429 = vshll.u32 %v428, 16
      %v430 = vadd.s32 %v429, %v427
      %v431 = vsel %vm407, %v416, 2147483647
      %v432 = vand.u32 %v431, 65535
      %v433 = vshra.s32 %v431, 16
      %v434 = vcvt.s32.f32 %v432
      %v435 = vcvt.s32.f32 %v433
      %436 = vmin.xlane.f32.xlu0 %v435
      %v437 = vpop.xlane.xlu0 %436
      %vm438 = vcmp.eq.f32.partialorder %v435, %v437
      %v439 = vsel %vm438, %v434, inf
      %440 = vmin.xlane.f32.xlu0 %v439
      %v441 = vpop.xlane.xlu0 %440
      %v442 = vcvt.f32.s32 %v441
      %v443 = vcvt.f32.s32 %v437
      %v444 = vshll.u32 %v443, 16
      %v445 = vadd.s32 %v444, %v442
      %vm446 = vcmp.lt.s32.totalorder %v430, 30
      %v447 = vsel %vm446, %v430, 30
      %vm448 = vcmp.lt.s32.totalorder %v445, 30
      %v449 = vsel %vm448, %v445, 30
      %v450 = vsub.f32 %v393, %v406
      %v451 = vsub.f32 %v396, %v410
      %v452 = vmul.f32 %v450, 1.442695
      %v453 = vpow.pop %v452
      %v454 = vmul.f32 %v451, 1.442695
      %v455 = vpow.pop %v454
      %456 = vadd.xlane.f32.xlu0 %v453
      %v457 = vpop.xlane.xlu0 %456
      %v458 = vsel %vm407, %v455, 0.0
      %459 = vadd.xlane.f32.xlu0 %v458
      %v460 = vpop.xlane.xlu0 %459
      %v461 = vrcp.pop %v457
      %v462 = vrcp.pop %v460
      %vm463 = vcmp.eq.s32.totalorder %v412, 0
      %v464 = vcvt.s32.f32 %v447
      %v465 = vcvt.s32.f32 %v449
      %v466 = vsel %vm463, %v464, %v461
      %v467 = vsel %vm463, %v465, %v462
      %vm468 = vcmask 15360
      %469 = vst.msk [vmem:[%s226] sm:$0xff] %vm468, %v466
      %vm470 = vcmask 8192
      %471 = vst.msk [vmem:[%s226 + $0x8] sm:$0x1] %vm470, %v467
      %p472 = scmp.lt.s32.totalorder %s16, 1
      %s473 = scalar_select %p472, %s16, 1
      %s474 = smul.addr %s473, 2
      %s475 = smul.addr %s474, 8
      %s476 = scalar_lea.vmem %s5, %s475
      // Predicated region
      $region41: #{tpu_custom_call.1} parent=39 // pred_check
        %p477 = pneg %p144
      $region42: #{tpu_custom_call.1} parent=39 // pred_check_branch
        %479 = sbr.rel (%p477) target = $region44
      $region43: #{tpu_custom_call.1} parent=39 // pred_region
        _
      $region44: #{tpu_custom_call.1} parent=39 // pred_fallthru
        _
    $region40: #{tpu_custom_call.1} parent=5 // pred_fallthru
      _
    %p480 = scmp.le.s32.totalorder 2, %s11
    // Predicated region
    $region45: #{tpu_custom_call.1} parent=5 // pred_check
      %p481 = pneg %p480
    $region46: #{tpu_custom_call.1} parent=5 // pred_check_branch
      %483 = sbr.rel (%p481) target = $region48
    $region47: #{tpu_custom_call.1} parent=5 // pred_region
      %s484 = ssub.s32 %s11, 2
      // Predicated region
      $region49: #{tpu_custom_call.1} parent=47 // pred_check
        %p485 = pneg %p150
      $region50: #{tpu_custom_call.1} parent=47 // pred_check_branch
        %487 = sbr.rel (%p485) target = $region52
      $region51: #{tpu_custom_call.1} parent=47 // pred_region
        %p488 = scmp.lt.s32.totalorder %s17, 1
        %s489 = scalar_select %p488, %s17, 1
        %s490 = smul.addr %s489, 2
        %s491 = smul.addr %s490, 8
        %s492 = scalar_lea.vmem %s5, %s491
      $region52: #{tpu_custom_call.1} parent=47 // pred_fallthru
        _
    $region48: #{tpu_custom_call.1} parent=5 // pred_fallthru
      _
  $region6: #{tpu_custom_call.1} parent=0 // loop_footer
    %s15 = sadd.s32 1, %s11
  $region7: #{tpu_custom_call.1} parent=0 // loop_footer_branch
    %10 = sbr.rel target = $region3
  $region8: #{tpu_custom_call.1} parent=0 // loop_exit
    _

</llo_original>
